<compile_context>
chip_gen: v6e
topology: v6e:2x2x1
jax: 0.10.0
libtpu: 0.0.40
codegen_flags: <defaults>
</compile_context>

<pallas_src>
import jax
import jax.numpy as jnp
from jax import lax
from jax.experimental import pallas as pl
from jax.experimental.pallas import tpu as pltpu


def _round_up(x, m):
    return ((x + m - 1) // m) * m


def _autopad(k):
    return k // 2


def _patch_embed_kernel(p_ref, w_ref, bias_ref, o_ref):
    # p_ref:    [TM, Kc_pad]        im2col patch tile
    # w_ref:    [Kc_pad, Cout_pad]  conv weight with folded BN scale (resident)
    # bias_ref: [1, Cout_pad]       folded BN bias (resident)
    # o_ref:    [TM, Cout_pad]
    o_ref[...] = (
        jnp.dot(p_ref[...], w_ref[...], preferred_element_type=jnp.float32)
        + bias_ref[...]
    )


def patch_embedding_forward(x, weight, gamma, beta, running_mean, running_var,
                            kernel_size, stride, eps=1e-3):
    """x: [N, Cin, H, W] float32 (NCHW). Returns [N, Cout, Ho, Wo] (PyTorch layout)."""
    N, Cin, H, W = x.shape
    Cout = weight.shape[0]
    K = kernel_size
    p = _autopad(K)
    Ho = (H + 2 * p - K) // stride + 1
    Wo = (W + 2 * p - K) // stride + 1
    Kc = Cin * K * K
    M = N * Ho * Wo

    # ---- glue: fused im2col gather (one XLA op, no python loops / stacks) ----
    # Output spec NHWC -> patch matrix is already row-major (M, Kc); patch channel
    # ordering is (Cin, Kh, Kw), matching PyTorch weight.reshape(Cout, -1).
    patches = lax.conv_general_dilated_patches(
        x, (K, K), (stride, stride), ((p, p), (p, p)),
        dimension_numbers=("NCHW", "OIHW", "NHWC"),
    ).reshape(M, Kc)
    # TODO(synk): fully fuse the patch gather into the Pallas kernel (pl.ANY input +
    # manual strided DMA over the padded image) to remove the im2col HBM round trip.

    # ---- glue: fold eval-mode BatchNorm into weight scale + per-channel bias ----
    inv_std = 1.0 / jnp.sqrt(running_var + eps)
    scale = gamma * inv_std                               # [Cout]
    bias = beta - running_mean * scale                    # [Cout]
    w2d = weight.reshape(Cout, Kc).T * scale[None, :]     # [Kc, Cout], BN-scaled

    # ---- lane-dense / (8,128)-aligned padding ----
    Kc_pad = _round_up(Kc, 128)
    Cout_pad = _round_up(Cout, 128)

    # M-tile size: keep a double-buffered input tile (~2 MiB cap per buffer) well
    # inside the scoped-VMEM budget of every generation (v7x is the tightest).
    bytes_per_row = Kc_pad * 4
    TM = min(1024, max(8, (2 * 1024 * 1024) // bytes_per_row))
    TM = max(8, (TM // 8) * 8)
    if M <= TM:
        TM = max(8, _round_up(M, 8))
    M_pad = _round_up(M, TM)

    patches_p = jnp.pad(patches, ((0, M_pad - M), (0, Kc_pad - Kc)))
    w_p = jnp.pad(w2d, ((0, Kc_pad - Kc), (0, Cout_pad - Cout)))
    bias_p = jnp.pad(bias[None, :], ((0, 0), (0, Cout_pad - Cout)))

    # ---- hot path: tiled, pipelined matmul + bias on the MXU ----
    out_p = pl.pallas_call(
        _patch_embed_kernel,
        out_shape=jax.ShapeDtypeStruct((M_pad, Cout_pad), jnp.float32),
        grid_spec=pltpu.PrefetchScalarGridSpec(
            num_scalar_prefetch=0,
            grid=(M_pad // TM,),
            in_specs=[
                pl.BlockSpec((TM, Kc_pad), lambda i: (i, 0)),       # streamed
                pl.BlockSpec((Kc_pad, Cout_pad), lambda i: (0, 0)),  # resident
                pl.BlockSpec((1, Cout_pad), lambda i: (0, 0)),       # resident
            ],
            out_specs=pl.BlockSpec((TM, Cout_pad), lambda i: (i, 0)),
        ),
        compiler_params=pltpu.CompilerParams(
            dimension_semantics=("parallel",),
        ),
    )(patches_p, w_p, bias_p)

    out2d = out_p[:M, :Cout]
    # ---- glue: back to NCHW to match the PyTorch module's output layout ----
    # TODO(synk): skip this transpose if the downstream consumer accepts NHWC.
    return jnp.transpose(out2d.reshape(N, Ho, Wo, Cout), (0, 3, 1, 2))


if __name__ == "__main__":
    # Module config (typical PoolFormer patch embed, kept small)
    in_chans, out_chans, kernel_size, stride = 4, 32, 7, 4
    N, H, W = 2, 16, 16

    key = jax.random.PRNGKey(0)
    kx, kw, kg, kb, km, kv = jax.random.split(key, 6)

    x = jax.random.normal(kx, (N, in_chans, H, W), dtype=jnp.float32)
    weight = jax.random.normal(kw, (out_chans, in_chans, kernel_size, kernel_size),
                               dtype=jnp.float32) * 0.05
    gamma = jax.random.normal(kg, (out_chans,), dtype=jnp.float32) * 0.1 + 1.0
    beta = jax.random.normal(kb, (out_chans,), dtype=jnp.float32) * 0.1
    running_mean = jax.random.normal(km, (out_chans,), dtype=jnp.float32) * 0.1
    running_var = jax.random.uniform(kv, (out_chans,), dtype=jnp.float32,
                                     minval=0.5, maxval=1.5)

    y = patch_embedding_forward(x, weight, gamma, beta, running_mean, running_var,
                                kernel_size, stride)
    jax.block_until_ready(y)

    # Silent reference check against XLA conv + eval-mode (folded) BN.
    p = kernel_size // 2
    y_conv = jax.lax.conv_general_dilated(
        x, weight, window_strides=(stride, stride),
        padding=((p, p), (p, p)),
        dimension_numbers=("NCHW", "OIHW", "NCHW"))
    eps = 1e-3
    s = (gamma / jnp.sqrt(running_var + eps)).reshape(1, out_chans, 1, 1)
    b = (beta - running_mean * gamma / jnp.sqrt(running_var + eps)).reshape(1, out_chans, 1, 1)
    y_ref = y_conv * s + b
    Ho = (H + 2 * p - kernel_size) // stride + 1
    Wo = (W + 2 * p - kernel_size) // stride + 1
    assert y.shape == (N, out_chans, Ho, Wo)
    assert jnp.allclose(y, y_ref, atol=1e-4, rtol=1e-4)

    print("KERNEL_OK")
</pallas_src>

<mosaic_0001>
module attributes {stable_mosaic.version = 11 : i64} {
  func.func @_patch_embed_kernel(%arg0: i32, %arg1: memref<32x256xf32, #tpu.memory_space<vmem>>, %arg2: memref<256x128xf32, #tpu.memory_space<vmem>>, %arg3: memref<1x128xf32, #tpu.memory_space<vmem>>, %arg4: memref<32x128xf32, #tpu.memory_space<vmem>>) attributes {dimension_semantics = [#tpu.dimension_semantics<parallel>], iteration_bounds = array<i64: 1>, scalar_prefetch = 0 : i64, scratch_operands = 0 : i64, tpu.core_type = #tpu.core_type<tc>, window_params = [{transform_indices = @transform_0, window_bounds = array<i64: 32, 256>}, {pipeline_mode = #tpu.pipeline_mode<synchronous>, transform_indices = @transform_1, window_bounds = array<i64: 256, 128>}, {pipeline_mode = #tpu.pipeline_mode<synchronous>, transform_indices = @transform_2, window_bounds = array<i64: 1, 128>}, {transform_indices = @transform_3, window_bounds = array<i64: 32, 128>}]} {
    %c0 = arith.constant 0 : index
    %c0_0 = arith.constant 0 : index
    %0 = vector.load %arg1[%c0, %c0_0] : memref<32x256xf32, #tpu.memory_space<vmem>>, vector<32x256xf32>
    %c0_1 = arith.constant 0 : index
    %c0_2 = arith.constant 0 : index
    %1 = vector.load %arg2[%c0_1, %c0_2] : memref<256x128xf32, #tpu.memory_space<vmem>>, vector<256x128xf32>
    %cst = arith.constant dense<0.000000e+00> : vector<32x128xf32>
    %2 = tpu.matmul %0, %1, %cst {dimension_numbers = #tpu.dot_dimension_numbers<[1], [0], [0], [1], [0, 0, 1, 1], [], []>} : vector<32x256xf32>, vector<256x128xf32>, vector<32x128xf32> -> vector<32x128xf32>
    %c0_3 = arith.constant 0 : index
    %c0_4 = arith.constant 0 : index
    %3 = vector.load %arg3[%c0_3, %c0_4] : memref<1x128xf32, #tpu.memory_space<vmem>>, vector<1x128xf32>
    %4 = vector.broadcast %3 : vector<1x128xf32> to vector<32x128xf32>
    %5 = arith.addf %2, %4 : vector<32x128xf32>
    %c0_5 = arith.constant 0 : index
    %c0_6 = arith.constant 0 : index
    %6 = vector.load %arg4[%c0_5, %c0_6] : memref<32x128xf32, #tpu.memory_space<vmem>>, vector<32x128xf32>
    tpu.vector_store %arg4[%c0_5, %c0_6], %5 {strides = array<i32>} : memref<32x128xf32, #tpu.memory_space<vmem>>, vector<32x128xf32>,
    return
  }
  func.func @transform_0(%arg0: i32) -> (i32, i32) {
    %c0_i32 = arith.constant 0 : i32
    %c0_i32_0 = arith.constant 0 : i32
    return %arg0, %c0_i32 : i32, i32
  }
  func.func @transform_1(%arg0: i32) -> (i32, i32) {
    %c0_i32 = arith.constant 0 : i32
    %c0_i32_0 = arith.constant 0 : i32
    %c0_i32_1 = arith.constant 0 : i32
    return %c0_i32, %c0_i32_0 : i32, i32
  }
  func.func @transform_2(%arg0: i32) -> (i32, i32) {
    %c0_i32 = arith.constant 0 : i32
    %c0_i32_0 = arith.constant 0 : i32
    %c0_i32_1 = arith.constant 0 : i32
    return %c0_i32, %c0_i32_0 : i32, i32
  }
  func.func @transform_3(%arg0: i32) -> (i32, i32) {
    %c0_i32 = arith.constant 0 : i32
    %c0_i32_0 = arith.constant 0 : i32
    return %arg0, %c0_i32 : i32, i32
  }
}

</mosaic_0001>

<llo_original>
// kernel: tpu_custom_call.1
$region0: #{tpu_custom_call.1}
  #allocation0 [shape = 'u32[]', space=smem, size = 0x4, offset = 0x4, fixed_abs, tag = 'smem constant byte address 0x4 - core index']
  #allocation1 [shape = 'u32[144,128]{1,0:T(1,128)}', space=vmem, size = 0x12000, scoped, tag = 'internal scratch']
  %s0 = inlined_call_operand.hbm [shape: f32[32,256], index: 0, kind: input, shape index: {}]
  %s1 = inlined_call_operand.hbm [shape: f32[256,128], index: 1, kind: input, shape index: {}]
  %s2 = inlined_call_operand.vmem [shape: f32[1,128], index: 2, kind: input, shape index: {}]
  %s3 = inlined_call_operand.hbm [shape: f32[32,128], index: 3, kind: output, shape index: {}]
  %s4 = sld [smem:[#allocation0]]
  $region30: #{tpu_custom_call.1} parent=0
    _
  %s6 = ssub.s32 1, %s4
  %s7 = scalar_select 0, %s6, %s4
  $region1: #{tpu_custom_call.1} parent=0
    #allocation2 [shape = 'u8[32768]{0}', space=vmem, size = 0x8000, scoped, tag = 'input window, operand 0, single buffered']
    #allocation3 [shape = 's32[1]{0}', space=sflag, size = 0x4, scoped, tag = 'scoped memory for tpu_custom_call.1']
    #allocation4 [shape = 's32[1]{0}', space=sflag, size = 0x4, scoped, tag = 'scoped memory for tpu_custom_call.1']
    #allocation5 [shape = 'u8[131072]{0}', space=vmem, size = 0x20000, scoped, tag = 'input window, operand 1, single buffered']
    #allocation6 [shape = 's32[1]{0}', space=sflag, size = 0x4, scoped, tag = 'scoped memory for tpu_custom_call.1']
    #allocation7 [shape = 'u8[16384]{0}', space=vmem, size = 0x4000, scoped, tag = 'output window, operand 0, single buffered']
    %8 = vsyncpa [#allocation3], 0
    %9 = vsyncpa [#allocation6], 0
    %10 = vsyncpa [#allocation4], 0
    // Predicated region
    $region2: #{tpu_custom_call.1} parent=1 // pred_check
      _
    $region3: #{tpu_custom_call.1} parent=1 // pred_check_branch
      %12 = sbr.rel (0) target = $region5
    $region4: #{tpu_custom_call.1} parent=1 // pred_region
      %s14 = ssub.s32 1024, 1024
      %15 = vsyncadd [#allocation3], %s14
      %s16 = sshll.u32 [#allocation2], 4
      %s17 = int_to_ptr.vmem [resolvable:$true] %s16
      %22 = dma.hbm_to_vmem [thread:$0]  %s0, 1024, %s17, [#allocation3], 256, 256, 16
    $region5: #{tpu_custom_call.1} parent=1 // pred_fallthru
      _
    // Predicated region
    $region6: #{tpu_custom_call.1} parent=1 // pred_check
      _
    $region7: #{tpu_custom_call.1} parent=1 // pred_check_branch
      %24 = sbr.rel (0) target = $region9
    $region8: #{tpu_custom_call.1} parent=1 // pred_region
      %s26 = ssub.s32 4096, 4096
      %27 = vsyncadd [#allocation6], %s26
      %s28 = sshll.u32 [#allocation5], 4
      %s29 = int_to_ptr.vmem [resolvable:$true] %s28
      %34 = dma.hbm_to_vmem [thread:$0]  %s1, 4096, %s29, [#allocation6], 128, 128, 8
    $region9: #{tpu_custom_call.1} parent=1 // pred_fallthru
      _
    // Predicated region
    $region10: #{tpu_custom_call.1} parent=1 // pred_check
      _
    $region11: #{tpu_custom_call.1} parent=1 // pred_check_branch
      %36 = sbr.rel (0) target = $region13
    $region12: #{tpu_custom_call.1} parent=1 // pred_region
      _
    $region13: #{tpu_custom_call.1} parent=1 // pred_fallthru
      _
    // Predicated region
    $region14: #{tpu_custom_call.1} parent=1 // pred_check
      _
    $region15: #{tpu_custom_call.1} parent=1 // pred_check_branch
      %38 = sbr.rel (0) target = $region17
    $region16: #{tpu_custom_call.1} parent=1 // pred_region
      %39 = dma.done [#allocation3], 1024
    $region17: #{tpu_custom_call.1} parent=1 // pred_fallthru
      _
    // Predicated region
    $region18: #{tpu_custom_call.1} parent=1 // pred_check
      _
    $region19: #{tpu_custom_call.1} parent=1 // pred_check_branch
      %41 = sbr.rel (0) target = $region21
    $region20: #{tpu_custom_call.1} parent=1 // pred_region
      %42 = dma.done [#allocation6], 4096
    $region21: #{tpu_custom_call.1} parent=1 // pred_fallthru
      _
    %v43 = vld [vmem:[#allocation2] sm:$0xff]
    %v44 = vld [vmem:[#allocation2 + $0x8] sm:$0xff]
    %v45 = vld [vmem:[#allocation2 + $0x10] sm:$0xff]
    %v46 = vld [vmem:[#allocation2 + $0x18] sm:$0xff]
    %v47 = vld [vmem:[#allocation2 + $0x20] sm:$0xff]
    %v48 = vld [vmem:[#allocation2 + $0x28] sm:$0xff]
    %v49 = vld [vmem:[#allocation2 + $0x30] sm:$0xff]
    %v50 = vld [vmem:[#allocation2 + $0x38] sm:$0xff]
    %v51 = vld [vmem:[#allocation5] sm:$0xff]
    %v52 = vld [vmem:[#allocation5 + $0x8] sm:$0xff]
    %v53 = vld [vmem:[#allocation5 + $0x10] sm:$0xff]
    %v54 = vld [vmem:[#allocation5 + $0x18] sm:$0xff]
    %v55 = vld [vmem:[#allocation5 + $0x20] sm:$0xff]
    %v56 = vld [vmem:[#allocation5 + $0x28] sm:$0xff]
    %v57 = vld [vmem:[#allocation5 + $0x30] sm:$0xff]
    %v58 = vld [vmem:[#allocation5 + $0x38] sm:$0xff]
    %v59 = vld [vmem:[#allocation5 + $0x40] sm:$0xff]
    %v60 = vld [vmem:[#allocation5 + $0x48] sm:$0xff]
    %v61 = vld [vmem:[#allocation5 + $0x50] sm:$0xff]
    %v62 = vld [vmem:[#allocation5 + $0x58] sm:$0xff]
    %v63 = vld [vmem:[#allocation5 + $0x60] sm:$0xff]
    %v64 = vld [vmem:[#allocation5 + $0x68] sm:$0xff]
    %v65 = vld [vmem:[#allocation5 + $0x70] sm:$0xff]
    %v66 = vld [vmem:[#allocation5 + $0x78] sm:$0xff]
    %v67 = vld [vmem:[#allocation5 + $0x80] sm:$0xff]
    %v68 = vld [vmem:[#allocation5 + $0x88] sm:$0xff]
    %v69 = vld [vmem:[#allocation5 + $0x90] sm:$0xff]
    %v70 = vld [vmem:[#allocation5 + $0x98] sm:$0xff]
    %v71 = vld [vmem:[#allocation5 + $0xa0] sm:$0xff]
    %v72 = vld [vmem:[#allocation5 + $0xa8] sm:$0xff]
    %v73 = vld [vmem:[#allocation5 + $0xb0] sm:$0xff]
    %v74 = vld [vmem:[#allocation5 + $0xb8] sm:$0xff]
    %v75 = vld [vmem:[#allocation5 + $0xc0] sm:$0xff]
    %v76 = vld [vmem:[#allocation5 + $0xc8] sm:$0xff]
    %v77 = vld [vmem:[#allocation5 + $0xd0] sm:$0xff]
    %v78 = vld [vmem:[#allocation5 + $0xd8] sm:$0xff]
    %v79 = vld [vmem:[#allocation5 + $0xe0] sm:$0xff]
    %v80 = vld [vmem:[#allocation5 + $0xe8] sm:$0xff]
    %v81 = vld [vmem:[#allocation5 + $0xf0] sm:$0xff]
    %v82 = vld [vmem:[#allocation5 + $0xf8] sm:$0xff]
    %v83 = vld [vmem:[%s2] sm:$0x1]
    %v85 = vlaneseq
    %v86 = vshrl.u32 %v85, 7
    %v87 = vsub.s32 0, %v86
    %v88 = vrot.slane %v83, %v87
    %90 = vmatprep.subr.mxu0 0.0
    %91 = vmatpush1.msra.mxu0 %v66
    %92 = vmatprep.subr.mxu0 0.0
    %93 = vmatpush1.msra.mxu0 %v65
    %94 = vmatprep.subr.mxu0 0.0
    %95 = vmatpush1.msra.mxu0 %v64
    %96 = vmatprep.subr.mxu0 0.0
    %97 = vmatpush1.msra.mxu0 %v63
    %98 = vmatprep.subr.mxu0 0.0
    %99 = vmatpush1.msra.mxu0 %v62
    %100 = vmatprep.subr.mxu0 0.0
    %101 = vmatpush1.msra.mxu0 %v61
    %102 = vmatprep.subr.mxu0 0.0
    %103 = vmatpush1.msra.mxu0 %v60
    %104 = vmatprep.subr.mxu0 0.0
    %105 = vmatpush1.msra.mxu0 %v59
    %106 = vmatprep.subr.mxu0 0.0
    %107 = vmatpush1.msra.mxu0 %v58
    %108 = vmatprep.subr.mxu0 0.0
    %109 = vmatpush1.msra.mxu0 %v57
    %110 = vmatprep.subr.mxu0 0.0
    %111 = vmatpush1.msra.mxu0 %v56
    %112 = vmatprep.subr.mxu0 0.0
    %113 = vmatpush1.msra.mxu0 %v55
    %114 = vmatprep.subr.mxu0 0.0
    %115 = vmatpush1.msra.mxu0 %v54
    %116 = vmatprep.subr.mxu0 0.0
    %117 = vmatpush1.msra.mxu0 %v53
    %118 = vmatprep.subr.mxu0 0.0
    %119 = vmatpush1.msra.mxu0 %v52
    %120 = vmatprep.subr.mxu0 0.0
    %121 = vmatpush1.msra.mxu0 %v51
    %122 = vmatprep.subr.mxu0 0.0
    %123 = vmatpush2.msra.mxu0 %v82
    %124 = vmatprep.subr.mxu0 0.0
    %125 = vmatpush2.msra.mxu0 %v81
    %126 = vmatprep.subr.mxu0 0.0
    %127 = vmatpush2.msra.mxu0 %v80
    %128 = vmatprep.subr.mxu0 0.0
    %129 = vmatpush2.msra.mxu0 %v79
    %130 = vmatprep.subr.mxu0 0.0
    %131 = vmatpush2.msra.mxu0 %v78
    %132 = vmatprep.subr.mxu0 0.0
    %133 = vmatpush2.msra.mxu0 %v77
    %134 = vmatprep.subr.mxu0 0.0
    %135 = vmatpush2.msra.mxu0 %v76
    %136 = vmatprep.subr.mxu0 0.0
    %137 = vmatpush2.msra.mxu0 %v75
    %138 = vmatprep.subr.mxu0 0.0
    %139 = vmatpush2.msra.mxu0 %v74
    %140 = vmatprep.subr.mxu0 0.0
    %141 = vmatpush2.msra.mxu0 %v73
    %142 = vmatprep.subr.mxu0 0.0
    %143 = vmatpush2.msra.mxu0 %v72
    %144 = vmatprep.subr.mxu0 0.0
    %145 = vmatpush2.msra.mxu0 %v71
    %146 = vmatprep.subr.mxu0 0.0
    %147 = vmatpush2.msra.mxu0 %v70
    %148 = vmatprep.subr.mxu0 0.0
    %149 = vmatpush2.msra.mxu0 %v69
    %150 = vmatprep.subr.mxu0 0.0
    %151 = vmatpush2.msra.mxu0 %v68
    %152 = vmatprep.subr.mxu0 0.0
    %153 = vmatpush2.msra.mxu0 %v67
    %154 = vmatprep.mubr.f32.mxu0 %v44
    %155 = vmatmul.mubr.f32.gmra.mxu0 %v43
    %v156 = vpop.f32.mrf.mxu0
    %v157 = vadd.f32 %v88, %v156
    %v158 = vpop.f32.mrf.mxu0
    %159 = vmatprep.mubr.f32.mxu0 %v46
    %160 = vmatmul.mubr.f32.gmra.mxu0 %v45
    %v161 = vpop.f32.mrf.mxu0
    %v162 = vadd.f32 %v88, %v161
    %v163 = vpop.f32.mrf.mxu0
    %164 = vmatprep.mubr.f32.mxu0 %v48
    %165 = vmatmul.mubr.f32.gmra.mxu0 %v47
    %v166 = vpop.f32.mrf.mxu0
    %v167 = vadd.f32 %v88, %v166
    %v168 = vpop.f32.mrf.mxu0
    %169 = vmatprep.mubr.f32.mxu0 %v50
    %170 = vmatmul.mubr.f32.gmra.mxu0 %v49
    %v171 = vpop.f32.mrf.mxu0
    %v172 = vadd.f32 %v88, %v171
    %v173 = vpop.f32.mrf.mxu0
    %174 = vdwg.mxu0
    %175 = vst [vmem:[#allocation7] sm:$0xff] %v157
    %176 = vst [vmem:[#allocation7 + $0x8] sm:$0xff] %v162
    %177 = vst [vmem:[#allocation7 + $0x10] sm:$0xff] %v167
    %178 = vst [vmem:[#allocation7 + $0x18] sm:$0xff] %v172
    // Predicated region
    $region22: #{tpu_custom_call.1} parent=1 // pred_check
      _
    $region23: #{tpu_custom_call.1} parent=1 // pred_check_branch
      %180 = sbr.rel (0) target = $region25
    $region24: #{tpu_custom_call.1} parent=1 // pred_region
      %s182 = ssub.s32 512, 512
      %183 = vsyncadd [#allocation4], %s182
      %s184 = sshll.u32 [#allocation7], 4
      %s185 = int_to_ptr.vmem [resolvable:$true] %s184
      %190 = dma.vmem_to_hbm [thread:$0]  %s185, 512, %s3, [#allocation4], 128, 128, 8
    $region25: #{tpu_custom_call.1} parent=1 // pred_fallthru
      _
    // Predicated region
    $region26: #{tpu_custom_call.1} parent=1 // pred_check
      _
    $region27: #{tpu_custom_call.1} parent=1 // pred_check_branch
      %192 = sbr.rel (0) target = $region29
    $region28: #{tpu_custom_call.1} parent=1 // pred_region
      %193 = dma.done [#allocation4], 512
    $region29: #{tpu_custom_call.1} parent=1 // pred_fallthru
      _
    %194 = vsyncpa [#allocation3], 1
    %195 = vsyncpa [#allocation6], 1
    %196 = vsyncpa [#allocation4], 1

</llo_original>
